<compile_context>
chip_gen: v7x
topology: tpu7x:2x2x1
jax: 0.10.0
libtpu: 0.0.40
codegen_flags: <defaults>
</compile_context>

<pallas_src>
import jax
import jax.numpy as jnp
from jax.experimental import pallas as pl
from jax.experimental.pallas import tpu as pltpu


# Lane widths tried for the lane-dense reshape (all multiples of 128).
_LANE_WIDTHS = (2048, 1024, 512, 256, 128)
_DEFAULT_CHUNK_BYTES = 4 * 1024 * 1024   # target bytes per DMA chunk
_MAX_CHUNKS = 8                           # cap on concurrent DMAs


def _make_hbm_copy_kernel(chunks):
    """Build a kernel that copies an HBM array to an HBM output via DMAs.

    `chunks` is a static tuple of (row_offset, row_count) pairs covering the
    whole (rows, lane) array.  All DMAs are started first, then waited on, so
    multiple DMA engines can stream concurrently.
    """

    def kernel(x_hbm, o_hbm, sems):
        copies = []
        for i, (off, sz) in enumerate(chunks):
            cp = pltpu.make_async_copy(
                x_hbm.at[pl.ds(off, sz), :],
                o_hbm.at[pl.ds(off, sz), :],
                sems.at[i],
            )
            cp.start()
            copies.append(cp)
        for cp in copies:
            cp.wait()

    return kernel


def _pallas_identity_copy(x, *, target_chunk_bytes: int = _DEFAULT_CHUNK_BYTES):
    """Identity copy of `x` via direct, chunked HBM->HBM DMAs."""
    orig_shape = x.shape
    total = x.size
    if total == 0:
        return x  # nothing to copy

    # Lane-dense presentation of the flat buffer when the element count is
    # 128-divisible; otherwise fall back to the original last dim (or a
    # single row).  Layout only affects DMA descriptor efficiency here —
    # chunks along rows of a row-major slab are fully contiguous.
    lane = None
    for w in _LANE_WIDTHS:
        if total % w == 0:
            lane = w
            break
    if lane is None:
        lane = orig_shape[-1] if x.ndim >= 2 else total
    rows = total // lane
    x2 = x.reshape(rows, lane)

    itemsize = x2.dtype.itemsize
    total_bytes = total * itemsize
    num_chunks = max(1, min(_MAX_CHUNKS,
                            pl.cdiv(total_bytes, max(1, target_chunk_bytes)),
                            rows))

    # Static, near-even row split (computed in Python, so all slices are
    # compile-time constants).
    base, rem = divmod(rows, num_chunks)
    chunks = []
    off = 0
    for i in range(num_chunks):
        sz = base + (1 if i < rem else 0)
        if sz == 0:
            continue
        chunks.append((off, sz))
        off += sz
    chunks = tuple(chunks)

    out2 = pl.pallas_call(
        _make_hbm_copy_kernel(chunks),
        out_shape=jax.ShapeDtypeStruct((rows, lane), x2.dtype),
        in_specs=[pl.BlockSpec(memory_space=pl.ANY)],
        out_specs=pl.BlockSpec(memory_space=pl.ANY),
        scratch_shapes=[pltpu.SemaphoreType.DMA((len(chunks),))],
    )(x2)

    return out2.reshape(orig_shape)


def attribute_identity(*args, index: int = 0, materialize: bool = True):
    """Pallas equivalent of AttributeIdentity.forward(*args) -> args[index].

    With materialize=False (preferred inside a larger jitted graph) the
    selected argument is returned as-is — zero HBM traffic, XLA aliases the
    buffer.  With materialize=True an explicit identity copy is produced by
    the HBM->HBM DMA kernel (used here so the kernel is exercised).
    """
    assert len(args) >= 1
    assert -len(args) <= index < len(args)
    selected = jnp.asarray(args[index])
    if not materialize:
        return selected
    return _pallas_identity_copy(selected)


if __name__ == "__main__":
    key = jax.random.PRNGKey(0)
    k0, k1, k2, k3 = jax.random.split(key, 4)

    # Small shapes consistent with the helper-module context:
    # batch=2, seq=8, hidden=32/64 (plus an extra 2-D "attribute" arg).
    x0 = jax.random.normal(k0, (2, 8, 32), dtype=jnp.float32)
    x1 = jax.random.normal(k1, (2, 8, 64), dtype=jnp.float32)
    x2 = jax.random.normal(k2, (2, 8), dtype=jnp.float32)

    # Default index=0 (matches AttributeIdentity()).
    out0 = jax.block_until_ready(attribute_identity(x0, x1, x2, index=0))
    assert out0.shape == x0.shape and out0.dtype == x0.dtype
    assert jnp.array_equal(out0, x0), "mismatch for index=0"

    # Non-default index, different shape (lane-dense single-DMA path).
    out1 = jax.block_until_ready(attribute_identity(x0, x1, x2, index=1))
    assert out1.shape == x1.shape and out1.dtype == x1.dtype
    assert jnp.array_equal(out1, x1), "mismatch for index=1"

    # 2-D argument, element count not 128-divisible (fallback layout path).
    out2 = jax.block_until_ready(attribute_identity(x0, x1, x2, index=2))
    assert out2.shape == x2.shape and out2.dtype == x2.dtype
    assert jnp.array_equal(out2, x2), "mismatch for index=2"

    # Multi-chunk DMA path (forced small chunk budget) with a bf16 input.
    x3 = jax.random.normal(k3, (64, 40)).astype(jnp.bfloat16)
    out3 = jax.block_until_ready(
        _pallas_identity_copy(x3, target_chunk_bytes=1024))
    assert out3.shape == x3.shape and out3.dtype == x3.dtype
    assert jnp.array_equal(out3, x3), "mismatch for chunked bf16 copy"

    # Zero-copy fast path (preferred in production graphs), negative index.
    out4 = attribute_identity(x0, x1, index=-1, materialize=False)
    assert jnp.array_equal(out4, x1), "mismatch for materialize=False"

    print("KERNEL_OK")
</pallas_src>

<mosaic_0001>
module attributes {stable_mosaic.version = 11 : i64} {
  func.func @kernel(%arg0: memref<1x512xf32, #tpu.memory_space<any>>, %arg1: memref<1x512xf32, #tpu.memory_space<any>>, %arg2: memref<1x!tpu.dma_semaphore, #tpu.memory_space<semaphore_mem>>) attributes {dimension_semantics = [], scalar_prefetch = 0 : i64, scratch_operands = 1 : i64, tpu.core_type = #tpu.core_type<tc>} {
    %c0_i32 = arith.constant 0 : i32
    %c0_i32_0 = arith.constant 0 : i32
    %c0_i32_1 = arith.constant 0 : i32
    %0 = tpu.memref_slice %arg0[%c0_i32_0, %c0_i32_1] : memref<1x512xf32, #tpu.memory_space<any>> -> memref<1x512xf32, #tpu.memory_space<any>>
    %c0_i32_2 = arith.constant 0 : i32
    %c0_i32_3 = arith.constant 0 : i32
    %1 = tpu.memref_slice %arg1[%c0_i32_2, %c0_i32_3] : memref<1x512xf32, #tpu.memory_space<any>> -> memref<1x512xf32, #tpu.memory_space<any>>
    %2 = tpu.memref_slice %arg2[%c0_i32] : memref<1x!tpu.dma_semaphore, #tpu.memory_space<semaphore_mem>> -> memref<1x!tpu.dma_semaphore, #tpu.memory_space<semaphore_mem>>
    %3 = tpu.memref_squeeze %2 : memref<1x!tpu.dma_semaphore, #tpu.memory_space<semaphore_mem>> -> memref<!tpu.dma_semaphore, #tpu.memory_space<semaphore_mem>>
    tpu.enqueue_dma source(%0 : memref<1x512xf32, #tpu.memory_space<any>>) target(%1 : memref<1x512xf32, #tpu.memory_space<any>>) target_semaphore(%3 : memref<!tpu.dma_semaphore, #tpu.memory_space<semaphore_mem>>)
    %c0_i32_4 = arith.constant 0 : i32
    %c0_i32_5 = arith.constant 0 : i32
    %c0_i32_6 = arith.constant 0 : i32
    %4 = tpu.memref_slice %arg0[%c0_i32_5, %c0_i32_6] : memref<1x512xf32, #tpu.memory_space<any>> -> memref<1x512xf32, #tpu.memory_space<any>>
    %c0_i32_7 = arith.constant 0 : i32
    %c0_i32_8 = arith.constant 0 : i32
    %5 = tpu.memref_slice %arg1[%c0_i32_7, %c0_i32_8] : memref<1x512xf32, #tpu.memory_space<any>> -> memref<1x512xf32, #tpu.memory_space<any>>
    %6 = tpu.memref_slice %arg2[%c0_i32_4] : memref<1x!tpu.dma_semaphore, #tpu.memory_space<semaphore_mem>> -> memref<1x!tpu.dma_semaphore, #tpu.memory_space<semaphore_mem>>
    %7 = tpu.memref_squeeze %6 : memref<1x!tpu.dma_semaphore, #tpu.memory_space<semaphore_mem>> -> memref<!tpu.dma_semaphore, #tpu.memory_space<semaphore_mem>>
    tpu.wait_dma2 semaphore(%7 : memref<!tpu.dma_semaphore, #tpu.memory_space<semaphore_mem>>) src(%4 : memref<1x512xf32, #tpu.memory_space<any>>) dst(%5 : memref<1x512xf32, #tpu.memory_space<any>>)
    return
  }
}

</mosaic_0001>

<llo_original>
// kernel: tpu_custom_call.1
$region0: #{tpu_custom_call.1}
  #allocation0 [shape = 'u32[]', space=smem, size = 0x4, offset = 0x4, fixed_abs, tag = 'smem constant byte address 0x4 - core index']
  #allocation1 [shape = 'u32[144,128]{1,0:T(1,128)}', space=vmem, size = 0x12000, scoped, tag = 'internal scratch']
  #allocation2 [shape = 's32[1]{0}', space=sflag, size = 0x4, scoped, tag = 'scratch operand']
  #allocation3 [shape = 's32[]', space=sflag, size = 0x4, offset = 0, fixed_abs, tag = 'sflag constant byte address 0x0 - dummy sync flag']
  #allocation4 [shape = 'u32[0]{0}', space=smem, size = 0, offset = 0, fixed_abs, tag = 'smem constant byte address 0x0 - null']
  %s0 = inlined_call_operand.hbm [shape: f32[1,512], index: 0, kind: input, shape index: {}]
  %s1 = inlined_call_operand.hbm [shape: f32[1,512], index: 1, kind: output, shape index: {}]
  %s2 = sld [smem:[#allocation0]]
  $region2: #{tpu_custom_call.1} parent=0
    _
  %s4 = ssub.s32 1, %s2
  %s5 = scalar_select 0, %s4, %s2
  %s7 = sshll.u32 1, 14
  %s8 = sxor.u32 4294967295, %s7
  %s11 = sshll.u32 3, 24
  %s12 = sxor.u32 4294967295, %s11
  %s13 = sand.u32 0, %s12
  %s15 = sor.u32 %s13, 0
  %18 = dma.general %s0, 64, %s1, [#allocation2], [#allocation3], [#allocation4], %s15, 0
  %s19 = smul.u32 1, 4
  %s20 = sshll.u32 %s19, 4
  %21 = dma.done [#allocation2], %s20
  %22 = vsyncmov [#allocation2]
  %s23 = vpop.sfrf %22
  %p24 = scmp.eq.s32.totalorder %s23, 0
  %p25 = pneg %p24
  %27 = shalt.err (%p25)

</llo_original>
